<compile_context>
chip_gen: v6e
topology: v6e:2x2x1
jax: 0.10.0
libtpu: 0.0.40
codegen_flags: <defaults>
</compile_context>

<pallas_src>
import jax
import jax.numpy as jnp
from jax.experimental import pallas as pl
from jax.experimental.pallas import tpu as pltpu

ALPHA = 1.0
GAMMA = 2  # kernel specializes gamma == 2 (explicit square; no EUP pow)


def _vmem_limit_bytes():
    """Generation-aware scoped-VMEM limit: ~3/4 of physical, capped at 96 MiB.
    v5e/v6e (128 MiB) -> 96 MiB; v7x (64 MiB per TC) -> 48 MiB."""
    phys = 64 * 1024 * 1024  # conservative fallback (v7x per-TC VMEM)
    try:
        info = pltpu.get_tpu_info()
        phys = int(getattr(info, "vmem_capacity_bytes", phys))
    except Exception:
        pass
    return min((phys * 3) // 4, 96 * 1024 * 1024)


def _choose_tile_n(n, c, in_itemsize, vmem_limit):
    """Pick the batch-tile size from a byte budget that covers the real
    per-step working set (not just the input double-buffers)."""
    if n <= 8:
        return n
    budget = vmem_limit // 2                  # 2x headroom under the scoped limit
    per_row = 2 * c * in_itemsize             # double-buffered logits tiles
    per_row += 2 * 128 * 4                    # double-buffered lane-padded targets
    per_row += 5 * c * 4                      # ~5 live (tile_n, C) f32 temporaries
    max_rows = max(8, budget // per_row)
    tile = min(n, 8192, max_rows)             # cap bounds targets-DMA granules too
    tile = max(8, (tile // 8) * 8)            # sublane-aligned
    return tile


def _make_focal_loss_kernel(n_total, tile_n):
    def kernel(logits_ref, targets_ref, out_ref):
        i = pl.program_id(0)

        # Cast per block: bf16 on the wire, f32 math in-core.
        logits = logits_ref[...].astype(jnp.float32)      # (tile_n, C) f32
        tgt = targets_ref[...]                            # (tile_n, 1) int32
        tn, c = logits.shape

        # Numerically stable softmax pieces; the max `m` cancels in ce.
        m = jnp.max(logits, axis=-1, keepdims=True)        # (tile_n, 1)
        shifted = logits - m                                # raw f32 logits die here
        sum_exp = jnp.sum(jnp.exp(shifted), axis=-1, keepdims=True)

        # Target gather without onehot cast + multiply (2 fewer VPU passes):
        col_ids = jax.lax.broadcasted_iota(jnp.int32, (tn, c), 1)
        tgt_shifted = jnp.sum(jnp.where(col_ids == tgt, shifted, 0.0),
                              axis=-1, keepdims=True)      # (tile_n, 1)
        # NOTE: out-of-range targets silently give tgt_shifted = 0 (no error),
        # unlike PyTorch's NLL path.

        # ce = logsumexp(logits) - logits[target]  (the +m terms cancel)
        ce = jnp.maximum(jnp.log(sum_exp) - tgt_shifted, 0.0)

        # focal = alpha * (1 - pt)^2 * ce  (explicit square, gamma == 2)
        pt = jnp.exp(-ce)
        omp = 1.0 - pt
        focal = ALPHA * (omp * omp) * ce                   # (tile_n, 1)

        # Mask padded rows of a partial last tile (where selects -> NaN-safe).
        row_ids = jax.lax.broadcasted_iota(jnp.int32, (tn, 1), 0) + i * tile_n
        focal = jnp.where(row_ids < n_total, focal, 0.0)

        # Lane-dense per-tile partial sum.
        out_ref[...] = jnp.full((1, 1, 128), jnp.sum(focal), dtype=jnp.float32)

    return kernel


def focal_loss(logits, targets, reduction="mean", tile_n=None):
    """logits: [N, C] float (f32 or bf16), targets: [N] int -> scalar f32."""
    n, c = logits.shape
    vmem_limit = _vmem_limit_bytes()
    if tile_n is None:
        tile_n = _choose_tile_n(n, c, logits.dtype.itemsize, vmem_limit)
    g = pl.cdiv(n, tile_n)

    targets_2d = targets.astype(jnp.int32).reshape(n, 1)

    partials = pl.pallas_call(
        _make_focal_loss_kernel(n, tile_n),
        out_shape=jax.ShapeDtypeStruct((g, 1, 128), jnp.float32),
        grid_spec=pltpu.PrefetchScalarGridSpec(
            num_scalar_prefetch=0,
            grid=(g,),
            in_specs=[
                pl.BlockSpec((tile_n, c), lambda i: (i, 0)),   # logits tile
                pl.BlockSpec((tile_n, 1), lambda i: (i, 0)),   # targets tile
            ],
            out_specs=pl.BlockSpec((1, 1, 128), lambda i: (i, 0, 0)),
        ),
        compiler_params=pltpu.CompilerParams(
            dimension_semantics=("parallel",),
            vmem_limit_bytes=vmem_limit,
        ),
    )(logits, targets_2d)

    total = jnp.sum(partials[:, 0, 0])
    if reduction == "sum":
        return total
    # default: 'mean' over the true batch size
    return total / jnp.float32(n)


def focal_loss_ref(logits, targets):
    """Pure-JAX reference matching the PyTorch module (mean reduction)."""
    logits = logits.astype(jnp.float32)
    logp = jax.nn.log_softmax(logits, axis=-1)
    ce = -jnp.take_along_axis(logp, targets[:, None].astype(jnp.int32), axis=-1)[:, 0]
    pt = jnp.exp(-ce)
    focal = ALPHA * (1.0 - pt) ** GAMMA * ce
    return jnp.mean(focal)


if __name__ == "__main__":
    key = jax.random.PRNGKey(0)
    k1, k2, k3 = jax.random.split(key, 3)

    # Test 1: f32 logits, single tile.
    N, C = 8, 32
    logits = jax.random.normal(k1, (N, C), dtype=jnp.float32)
    targets = jax.random.randint(k2, (N,), 0, C, dtype=jnp.int32)
    out = jax.block_until_ready(focal_loss(logits, targets))
    ref = focal_loss_ref(logits, targets)
    assert jnp.allclose(out, ref, rtol=1e-5, atol=1e-6), (out, ref)

    # Test 2: multi-step grid with a partial last tile (N % tile_n != 0);
    # locks in the padded-row masking assumption.
    N2, C2 = 10, 32
    logits2 = jax.random.normal(k3, (N2, C2), dtype=jnp.float32)
    targets2 = jax.random.randint(k2, (N2,), 0, C2, dtype=jnp.int32)
    out2 = jax.block_until_ready(focal_loss(logits2, targets2, tile_n=8))
    ref2 = focal_loss_ref(logits2, targets2)
    assert jnp.allclose(out2, ref2, rtol=1e-5, atol=1e-6), (out2, ref2)

    # Test 3: bf16 logits on the wire, f32 math in-kernel.
    logits_bf16 = logits.astype(jnp.bfloat16)
    out3 = jax.block_until_ready(focal_loss(logits_bf16, targets))
    ref3 = focal_loss_ref(logits_bf16, targets)
    assert jnp.allclose(out3, ref3, rtol=5e-2, atol=5e-3), (out3, ref3)

    print("KERNEL_OK")
</pallas_src>

<mosaic_0001>
module attributes {stable_mosaic.version = 11 : i64} {
  func.func @kernel(%arg0: i32, %arg1: memref<8x32xf32, #tpu.memory_space<vmem>>, %arg2: memref<8x1xi32, #tpu.memory_space<vmem>>, %arg3: memref<1x1x128xf32, #tpu.memory_space<vmem>>) attributes {dimension_semantics = [#tpu.dimension_semantics<parallel>], iteration_bounds = array<i64: 1>, scalar_prefetch = 0 : i64, scratch_operands = 0 : i64, tpu.core_type = #tpu.core_type<tc>, window_params = [{transform_indices = @transform_0, window_bounds = array<i64: 8, 32>}, {transform_indices = @transform_1, window_bounds = array<i64: 8, 1>}, {transform_indices = @transform_2, window_bounds = array<i64: 1, 1, 128>}]} {
    %c0 = arith.constant 0 : index
    %c0_0 = arith.constant 0 : index
    %0 = vector.load %arg1[%c0, %c0_0] : memref<8x32xf32, #tpu.memory_space<vmem>>, vector<8x32xf32>
    %c0_1 = arith.constant 0 : index
    %c0_2 = arith.constant 0 : index
    %1 = vector.load %arg2[%c0_1, %c0_2] : memref<8x1xi32, #tpu.memory_space<vmem>>, vector<8x1xi32>
    %cst = arith.constant dense<0xFF800000> : vector<8xf32>
    %2 = vector.multi_reduction <maximumf>, %0, %cst [1] : vector<8x32xf32> to vector<8xf32>
    %3 = vector.shape_cast %2 : vector<8xf32> to vector<8x1xf32>
    %4 = vector.broadcast %3 : vector<8x1xf32> to vector<8x32xf32>
    %5 = arith.subf %0, %4 : vector<8x32xf32>
    %6 = math.exp %5 : vector<8x32xf32>
    %cst_3 = arith.constant dense<0.000000e+00> : vector<8xf32>
    %7 = vector.multi_reduction <add>, %6, %cst_3 [1] : vector<8x32xf32> to vector<8xf32>
    %8 = vector.shape_cast %7 : vector<8xf32> to vector<8x1xf32>
    %9 = tpu.iota {dimensions = array<i32: 1>} : vector<8x32xi32>
    %10 = vector.broadcast %1 : vector<8x1xi32> to vector<8x32xi32>
    %11 = arith.cmpi eq, %9, %10 : vector<8x32xi32>
    %cst_4 = arith.constant 0.000000e+00 : f32
    %12 = vector.broadcast %cst_4 : f32 to vector<8x32xf32>
    %13 = arith.select %11, %5, %12 : vector<8x32xi1>, vector<8x32xf32>
    %cst_5 = arith.constant dense<0.000000e+00> : vector<8xf32>
    %14 = vector.multi_reduction <add>, %13, %cst_5 [1] : vector<8x32xf32> to vector<8xf32>
    %15 = vector.shape_cast %14 : vector<8xf32> to vector<8x1xf32>
    %16 = math.log %8 : vector<8x1xf32>
    %17 = arith.subf %16, %15 : vector<8x1xf32>
    %cst_6 = arith.constant 0.000000e+00 : f32
    %18 = vector.broadcast %cst_6 : f32 to vector<8x1xf32>
    %19 = arith.maximumf %17, %18 : vector<8x1xf32>
    %cst_7 = arith.constant 0.000000e+00 : f32
    %20 = vector.broadcast %cst_7 : f32 to vector<8x1xf32>
    %21 = arith.subf %20, %19 : vector<8x1xf32>
    %22 = math.exp %21 : vector<8x1xf32>
    %cst_8 = arith.constant 1.000000e+00 : f32
    %23 = vector.broadcast %cst_8 : f32 to vector<8x1xf32>
    %24 = arith.subf %23, %22 : vector<8x1xf32>
    %25 = arith.mulf %24, %24 : vector<8x1xf32>
    %cst_9 = arith.constant 1.000000e+00 : f32
    %26 = vector.broadcast %cst_9 : f32 to vector<8x1xf32>
    %27 = arith.mulf %26, %25 : vector<8x1xf32>
    %28 = arith.mulf %27, %19 : vector<8x1xf32>
    %29 = tpu.iota {dimensions = array<i32: 0>} : vector<8x1xi32>
    %c8_i32 = arith.constant 8 : i32
    %30 = arith.muli %arg0, %c8_i32 : i32
    %31 = vector.broadcast %30 : i32 to vector<8x1xi32>
    %32 = arith.addi %29, %31 : vector<8x1xi32>
    %c8_i32_10 = arith.constant 8 : i32
    %33 = vector.broadcast %c8_i32_10 : i32 to vector<8x1xi32>
    %34 = arith.cmpi slt, %32, %33 : vector<8x1xi32>
    %cst_11 = arith.constant 0.000000e+00 : f32
    %35 = vector.broadcast %cst_11 : f32 to vector<8x1xf32>
    %36 = arith.select %34, %28, %35 : vector<8x1xi1>, vector<8x1xf32>
    %37 = vector.shape_cast %36 : vector<8x1xf32> to vector<1x8x1xf32>
    %cst_12 = arith.constant dense<0.000000e+00> : vector<1xf32>
    %38 = vector.multi_reduction <add>, %37, %cst_12 [1, 2] : vector<1x8x1xf32> to vector<1xf32>
    %39 = vector.shape_cast %38 : vector<1xf32> to vector<1x1x1xf32>
    %40 = vector.extract %39[0, 0, 0] : f32 from vector<1x1x1xf32>
    %41 = vector.broadcast %40 : f32 to vector<1x1x128xf32>
    %c0_13 = arith.constant 0 : index
    %c0_14 = arith.constant 0 : index
    %c0_15 = arith.constant 0 : index
    %42 = vector.load %arg3[%c0_13, %c0_14, %c0_15] : memref<1x1x128xf32, #tpu.memory_space<vmem>>, vector<1x1x128xf32>
    tpu.vector_store %arg3[%c0_13, %c0_14, %c0_15], %41 {strides = array<i32>} : memref<1x1x128xf32, #tpu.memory_space<vmem>>, vector<1x1x128xf32>,
    return
  }
  func.func @transform_0(%arg0: i32) -> (i32, i32) {
    %c0_i32 = arith.constant 0 : i32
    %c0_i32_0 = arith.constant 0 : i32
    return %arg0, %c0_i32 : i32, i32
  }
  func.func @transform_1(%arg0: i32) -> (i32, i32) {
    %c0_i32 = arith.constant 0 : i32
    %c0_i32_0 = arith.constant 0 : i32
    return %arg0, %c0_i32 : i32, i32
  }
  func.func @transform_2(%arg0: i32) -> (i32, i32, i32) {
    %c0_i32 = arith.constant 0 : i32
    %c0_i32_0 = arith.constant 0 : i32
    %c0_i32_1 = arith.constant 0 : i32
    return %arg0, %c0_i32, %c0_i32_0 : i32, i32, i32
  }
}

</mosaic_0001>

<llo_original>
// kernel: tpu_custom_call.1
$region0: #{tpu_custom_call.1}
  #allocation0 [shape = 'u32[]', space=smem, size = 0x4, offset = 0x4, fixed_abs, tag = 'smem constant byte address 0x4 - core index']
  #allocation1 [shape = 'u32[144,128]{1,0:T(1,128)}', space=vmem, size = 0x12000, scoped, tag = 'internal scratch']
  %s0 = inlined_call_operand.vmem [shape: f32[8,32], index: 0, kind: input, shape index: {}]
  %s1 = inlined_call_operand.vmem [shape: s32[8,1], index: 1, kind: input, shape index: {}]
  %s2 = inlined_call_operand.hbm [shape: f32[1,1,128], index: 2, kind: output, shape index: {}]
  %s3 = sld [smem:[#allocation0]]
  $region18: #{tpu_custom_call.1} parent=0
    _
  %s5 = ssub.s32 1, %s3
  %s6 = scalar_select 0, %s5, %s3
  $region1: #{tpu_custom_call.1} parent=0
    #allocation2 [shape = 'u8[512]{0}', space=vmem, size = 0x400, scoped, tag = 'output window, operand 0, single buffered']
    #allocation3 [shape = 's32[1]{0}', space=sflag, size = 0x4, scoped, tag = 'scoped memory for tpu_custom_call.1']
    %7 = vsyncpa [#allocation3], 0
    // Predicated region
    $region2: #{tpu_custom_call.1} parent=1 // pred_check
      _
    $region3: #{tpu_custom_call.1} parent=1 // pred_check_branch
      %9 = sbr.rel (0) target = $region5
    $region4: #{tpu_custom_call.1} parent=1 // pred_region
      _
    $region5: #{tpu_custom_call.1} parent=1 // pred_fallthru
      _
    // Predicated region
    $region6: #{tpu_custom_call.1} parent=1 // pred_check
      _
    $region7: #{tpu_custom_call.1} parent=1 // pred_check_branch
      %11 = sbr.rel (0) target = $region9
    $region8: #{tpu_custom_call.1} parent=1 // pred_region
      _
    $region9: #{tpu_custom_call.1} parent=1 // pred_fallthru
      _
    %v12 = vld [vmem:[%s0] sm:$0xff]
    %v13 = vld [vmem:[%s1] sm:$0xff]
    %vm14 = vcmask 261120
    %v15 = vsel %vm14, %v12, -inf
    %16 = vmax.xlane.f32.xlu0 %v15
    %v17 = vpop.xlane.xlu0 %16
    %v18 = vsub.f32 %v12, %v17
    %v19 = vmul.f32 %v18, 1.442695
    %v20 = vpow.pop %v19
    %v21 = vsel %vm14, %v20, 0.0
    %22 = vadd.xlane.f32.xlu0 %v21
    %v23 = vpop.xlane.xlu0 %22
    %v24 = vlaneseq
    %v25 = vand.u32 %v24, 127
    %26 = vset.pattern.permute.xlu0 0
    %27 = vperm.xlu0 %26, %v13
    %v28 = vpop.permute.xlu0 %27
    %vm29 = vcmp.eq.s32.totalorder %v25, %v28
    %v30 = vsel %vm29, %v18, 0.0
    %v31 = vsel %vm14, %v30, 0.0
    %32 = vadd.xlane.f32.xlu0 %v31
    %v33 = vpop.xlane.xlu0 %32
    %v34 = vlog2.pop %v23
    %v35 = vmul.f32 %v34, 0.6931472
    %v36 = vsub.f32 %v35, %v33
    %v37 = vmax.f32 %v36, 0.0
    %v38 = vsub.f32 0.0, %v37
    %v39 = vmul.f32 %v38, 1.442695
    %v40 = vpow.pop %v39
    %v41 = vsub.f32 1.0, %v40
    %v42 = vmul.f32 %v41, %v41
    %v43 = vmul.f32 %v42, %v37
    %v44 = vlaneseq
    %v45 = vshrl.u32 %v44, 7
    %s46 = smul.u32 0, 8
    %v47 = vstv %s46
    %v48 = vadd.s32 %v45, %v47
    %vm49 = vcmp.lt.s32.totalorder %v48, 8
    %v50 = vsel %vm49, %v43, 0.0
    %vm51 = vcmask 7168
    %v52 = vsel %vm51, %v50, 0.0
    %53 = vadd.xlane.f32.xlu0 %v52
    %v54 = vpop.xlane.xlu0 %53
    %v55 = vrot.slane %v54, 4
    %v56 = vadd.f32 %v54, %v55
    %v57 = vrot.slane %v56, 2
    %v58 = vadd.f32 %v56, %v57
    %v59 = vrot.slane %v58, 1
    %v60 = vadd.f32 %v58, %v59
    %s61 = vtos %v60
    %v62 = vstv %s61
    %63 = vst [vmem:[#allocation2] sm:$0x1] %v62
    // Predicated region
    $region10: #{tpu_custom_call.1} parent=1 // pred_check
      _
    $region11: #{tpu_custom_call.1} parent=1 // pred_check_branch
      %65 = sbr.rel (0) target = $region13
    $region12: #{tpu_custom_call.1} parent=1 // pred_region
      %s67 = ssub.s32 16, 16
      %68 = vsyncadd [#allocation3], %s67
      %s70 = sshll.u32 [#allocation2], 4
      %s71 = int_to_ptr.vmem [resolvable:$true] %s70
      %73 = dma.vmem_to_hbm [thread:$0]  %s71, 16, %s2, [#allocation3]
    $region13: #{tpu_custom_call.1} parent=1 // pred_fallthru
      _
    // Predicated region
    $region14: #{tpu_custom_call.1} parent=1 // pred_check
      _
    $region15: #{tpu_custom_call.1} parent=1 // pred_check_branch
      %75 = sbr.rel (0) target = $region17
    $region16: #{tpu_custom_call.1} parent=1 // pred_region
      %76 = dma.done [#allocation3], 16
    $region17: #{tpu_custom_call.1} parent=1 // pred_fallthru
      _
    %77 = vsyncpa [#allocation3], 1

</llo_original>
